<compile_context>
chip_gen: v5e
topology: v5e:2x2
jax: 0.10.0
libtpu: 0.0.40
codegen_flags: <defaults>
</compile_context>

<pallas_src>
import functools

import jax
import jax.numpy as jnp
from jax.experimental import pallas as pl
from jax.experimental.pallas import tpu as pltpu

_MiB = 1024 * 1024


def _vmem_budgets():
    """(vmem_limit, fused_block_budget, pass1_tile_budget, pass2_tile_budget)."""
    try:
        vmem = pltpu.get_tpu_info().vmem_capacity_bytes
    except Exception:  # pragma: no cover - conservative fallback
        vmem = 64 * _MiB
    if vmem >= 96 * _MiB:
        # v5e / v6e: 128 MiB physical VMEM.
        return 100 * _MiB, 20 * _MiB, 16 * _MiB, 8 * _MiB
    # v7x: 64 MiB per TensorCore.
    return 52 * _MiB, 10 * _MiB, 8 * _MiB, 4 * _MiB


# ----------------------------------------------------------------------------
# Kernels
# ----------------------------------------------------------------------------
def _se_fused_kernel(x_ref, w1t_ref, w2t_ref, o_ref):
    # x_ref: (Nb, C, L) batch-of-samples block; weights already f32/transposed.
    squeezed = jnp.mean(x_ref[...], axis=-1, dtype=jnp.float32)          # (Nb, C)
    excited = jnp.maximum(
        jnp.dot(squeezed, w1t_ref[...], preferred_element_type=jnp.float32), 0.0)
    scale = jax.nn.sigmoid(
        jnp.dot(excited, w2t_ref[...], preferred_element_type=jnp.float32))  # (Nb, C)
    # Recalibrate in x's native dtype; only the tiny scale vector is cast.
    o_ref[...] = x_ref[...] * scale[:, :, None].astype(o_ref.dtype)


def _se_mean_kernel(x_ref, mean_ref, acc_ref, *, true_len, l_tile, needs_mask):
    # Two-pass path, pass 1: per-sample channel means.
    # x_ref: (1, C, TL); mean_ref: (1, 1, C) f32; acc_ref: (1, C) f32 scratch.
    l = pl.program_id(1)

    @pl.when(l == 0)
    def _init():
        acc_ref[...] = jnp.zeros_like(acc_ref)

    xv = x_ref[...]
    if needs_mask:
        # Ragged last tile: zero out lanes past the true length before summing.
        lane = jax.lax.broadcasted_iota(jnp.int32, xv.shape, 2)
        xv = jnp.where(l * l_tile + lane < true_len, xv, jnp.zeros_like(xv))
    acc_ref[...] += jnp.sum(xv, axis=-1, dtype=jnp.float32)

    @pl.when(l == pl.num_programs(1) - 1)
    def _finalize():
        mean_ref[0] = acc_ref[...] * (1.0 / true_len)


def _se_apply_kernel(x_ref, scale_ref, o_ref):
    # Pass 2: pure lane-broadcast multiply; scale is pre-cast and (1, C, 1)
    # shaped (channel on sublanes) so there is no per-tile cast or relayout.
    o_ref[...] = x_ref[...] * scale_ref[...]


# ----------------------------------------------------------------------------
# Tiling helpers
# ----------------------------------------------------------------------------
def _pick_batch(N, per_sample_bytes, budget):
    """Samples per fused block: fits budget, divides N, keeps >=2 grid steps."""
    nb = max(1, min(N, budget // max(per_sample_bytes, 1)))
    if N >= 2:
        nb = min(nb, (N + 1) // 2)   # >= 2 parallel steps for v7x dual TCs
    while N % nb:
        nb -= 1
    return nb


def _pick_l_tile(C, L, itemsize, budget):
    """L-tile: multiple of 128 (or full L), as large as the budget allows.

    May return a tile that does not divide L (caller masks the ragged tail)."""
    if C * L * itemsize <= budget or L <= 128:
        return L
    max_tl = max(128, (budget // (C * itemsize)) // 128 * 128)
    if max_tl >= L:
        return L
    if L % max_tl == 0:
        return max_tl
    if L % 128 == 0:
        # Prefer a dividing 128-multiple unless it is much smaller than max_tl.
        for tl in range(min(max_tl, (L // 128) * 128), 127, -128):
            if L % tl == 0:
                if 2 * tl >= max_tl:
                    return tl
                break
    return max_tl   # ragged tail; pass 1 masks it, pass 2 uses masked writeback


# ----------------------------------------------------------------------------
# Wrappers
# ----------------------------------------------------------------------------
def _se_block_fused(x, w1t, w2t, nb, vmem_limit, donate_x):
    N, C, L = x.shape
    Cr = w1t.shape[1]
    itemsize = jnp.dtype(x.dtype).itemsize
    cost = pl.CostEstimate(
        flops=2 * N * C * L + 4 * N * C * Cr,
        transcendentals=N * C,
        bytes_accessed=2 * N * C * L * itemsize + 8 * C * Cr)
    extra = dict(input_output_aliases={0: 0}) if donate_x else {}
    return pl.pallas_call(
        _se_fused_kernel,
        out_shape=jax.ShapeDtypeStruct((N, C, L), x.dtype),
        grid_spec=pltpu.PrefetchScalarGridSpec(
            num_scalar_prefetch=0,
            grid=(N // nb,),
            in_specs=[
                pl.BlockSpec((nb, C, L), lambda n: (n, 0, 0)),
                pl.BlockSpec((C, Cr), lambda n: (0, 0)),
                pl.BlockSpec((Cr, C), lambda n: (0, 0)),
            ],
            out_specs=pl.BlockSpec((nb, C, L), lambda n: (n, 0, 0)),
        ),
        compiler_params=pltpu.CompilerParams(
            dimension_semantics=("parallel",),
            vmem_limit_bytes=vmem_limit),
        cost_estimate=cost,
        **extra,
    )(x, w1t, w2t)


def _se_block_two_pass(x, w1, w2, vmem_limit, tile_p1, tile_p2, l_tile, donate_x):
    N, C, L = x.shape
    itemsize = jnp.dtype(x.dtype).itemsize

    if l_tile is None:
        tl1 = _pick_l_tile(C, L, itemsize, tile_p1)   # pass 1: ~2x tile working set
        tl2 = _pick_l_tile(C, L, itemsize, tile_p2)   # pass 2: ~4x tile working set
    else:
        assert l_tile == L or l_tile % 128 == 0
        tl1 = tl2 = min(l_tile, L)

    n_l1 = pl.cdiv(L, tl1)
    n_l2 = pl.cdiv(L, tl2)
    needs_mask = (L % tl1) != 0

    # Pass 1: per-sample channel means -> (N, 1, C) f32. No weights / FC in the
    # streaming reduce loop; only x is read, only the tiny means are written.
    means = pl.pallas_call(
        functools.partial(_se_mean_kernel, true_len=L, l_tile=tl1,
                          needs_mask=needs_mask),
        out_shape=jax.ShapeDtypeStruct((N, 1, C), jnp.float32),
        grid_spec=pltpu.PrefetchScalarGridSpec(
            num_scalar_prefetch=0,
            grid=(N, n_l1),
            in_specs=[pl.BlockSpec((1, C, tl1), lambda n, l: (n, 0, l))],
            out_specs=pl.BlockSpec((1, 1, C), lambda n, l: (n, 0, 0)),
            scratch_shapes=[pltpu.VMEM((1, C), jnp.float32)],
        ),
        compiler_params=pltpu.CompilerParams(
            dimension_semantics=("parallel", "arbitrary"),
            vmem_limit_bytes=vmem_limit),
        cost_estimate=pl.CostEstimate(
            flops=N * C * L, transcendentals=0,
            bytes_accessed=N * C * L * itemsize + N * C * 4),
    )(x)

    # Excitation FCs batched over N in plain XLA (tiny; decent MXU utilization).
    mean = means.reshape(N, C)
    excited = jax.nn.relu(
        jnp.dot(mean, jnp.asarray(w1).astype(jnp.float32).T,
                preferred_element_type=jnp.float32))
    scale = jax.nn.sigmoid(
        jnp.dot(excited, jnp.asarray(w2).astype(jnp.float32).T,
                preferred_element_type=jnp.float32))
    # Pre-cast to x.dtype and lay out (N, C, 1): channel on sublanes so pass 2
    # does a pure in-vreg lane broadcast.
    scale = scale.astype(x.dtype).reshape(N, C, 1)

    # Pass 2: recalibration multiply, streamed lane-dense over (N, L-tiles).
    extra = dict(input_output_aliases={0: 0}) if donate_x else {}
    return pl.pallas_call(
        _se_apply_kernel,
        out_shape=jax.ShapeDtypeStruct((N, C, L), x.dtype),
        grid_spec=pltpu.PrefetchScalarGridSpec(
            num_scalar_prefetch=0,
            grid=(N, n_l2),
            in_specs=[
                pl.BlockSpec((1, C, tl2), lambda n, l: (n, 0, l)),
                pl.BlockSpec((1, C, 1), lambda n, l: (n, 0, 0)),
            ],
            out_specs=pl.BlockSpec((1, C, tl2), lambda n, l: (n, 0, l)),
        ),
        compiler_params=pltpu.CompilerParams(
            dimension_semantics=("parallel", "parallel"),
            vmem_limit_bytes=vmem_limit),
        cost_estimate=pl.CostEstimate(
            flops=N * C * L, transcendentals=0,
            bytes_accessed=2 * N * C * L * itemsize + N * C * itemsize),
        **extra,
    )(x, scale)


def se_block(x, w1, w2, *, force_two_pass=False, l_tile=None, donate_x=False):
    """SE block forward.

    x:  (N, C, L)
    w1: (C//r, C)   -- nn.Linear(channels, channels // r, bias=False).weight
    w2: (C, C//r)   -- nn.Linear(channels // r, channels, bias=False).weight
    donate_x: alias the output onto x's HBM buffer (only if caller donates x).
    """
    N, C, L = x.shape
    Cr = w1.shape[0]
    assert w1.shape == (Cr, C) and w2.shape == (C, Cr)

    vmem_limit, fused_budget, tile_p1, tile_p2 = _vmem_budgets()
    itemsize = jnp.dtype(x.dtype).itemsize
    per_sample = C * L * itemsize

    if not force_two_pass and per_sample <= fused_budget:
        # One-time parameter prep: pre-transpose / cast once at the call
        # boundary so the kernel does no per-grid-step transposes or casts.
        w1t = jnp.asarray(w1).astype(jnp.float32).T    # (C, Cr)
        w2t = jnp.asarray(w2).astype(jnp.float32).T    # (Cr, C)
        nb = _pick_batch(N, per_sample, fused_budget)
        return _se_block_fused(x, w1t, w2t, nb, vmem_limit, donate_x)
    return _se_block_two_pass(x, w1, w2, vmem_limit, tile_p1, tile_p2,
                              l_tile, donate_x)


def _se_block_ref(x, w1, w2):
    """Pure-JAX reference matching the PyTorch module."""
    squeezed = jnp.mean(x, axis=-1)                       # (N, C)
    excited = jax.nn.relu(squeezed @ w1.T)                # (N, Cr)
    scale = jax.nn.sigmoid(excited @ w2.T)[:, :, None]    # (N, C, 1)
    return x * scale


if __name__ == "__main__":
    key = jax.random.PRNGKey(0)
    kx, k1, k2, kx2, k3, k4 = jax.random.split(key, 6)

    # Shapes consistent with the module: channels divisible by reduction_ratio=16.
    N, C, L = 4, 64, 384
    reduction_ratio = 16
    Cr = C // reduction_ratio
    x = jax.random.normal(kx, (N, C, L), dtype=jnp.float32)
    w1 = jax.random.normal(k1, (Cr, C), dtype=jnp.float32) * (1.0 / jnp.sqrt(C))
    w2 = jax.random.normal(k2, (C, Cr), dtype=jnp.float32) * (1.0 / jnp.sqrt(Cr))
    ref = _se_block_ref(x, w1, w2)

    # Fused (sample-batched) path.
    out_fused = jax.block_until_ready(se_block(x, w1, w2))
    assert out_fused.shape == (N, C, L)
    assert jnp.allclose(out_fused, ref, atol=1e-5, rtol=1e-5)

    # Two-pass L-tiled path (exercised with a 128-wide L tile that divides L).
    out_tiled = jax.block_until_ready(
        se_block(x, w1, w2, force_two_pass=True, l_tile=128))
    assert out_tiled.shape == (N, C, L)
    assert jnp.allclose(out_tiled, ref, atol=1e-5, rtol=1e-5)

    # Ragged-L two-pass path (tile does not divide L): exercises tail masking
    # in pass 1 and masked writeback in pass 2.
    N2, C2, L2 = 2, 32, 200
    Cr2 = C2 // reduction_ratio
    x2 = jax.random.normal(kx2, (N2, C2, L2), dtype=jnp.float32)
    w1b = jax.random.normal(k3, (Cr2, C2), dtype=jnp.float32) * (1.0 / jnp.sqrt(C2))
    w2b = jax.random.normal(k4, (C2, Cr2), dtype=jnp.float32) * (1.0 / jnp.sqrt(Cr2))
    ref2 = _se_block_ref(x2, w1b, w2b)
    out_ragged = jax.block_until_ready(
        se_block(x2, w1b, w2b, force_two_pass=True, l_tile=128))
    assert out_ragged.shape == (N2, C2, L2)
    assert jnp.allclose(out_ragged, ref2, atol=1e-5, rtol=1e-5)

    print("KERNEL_OK")
</pallas_src>

<mosaic_0001>
module attributes {stable_mosaic.version = 11 : i64} {
  func.func @_se_fused_kernel(%arg0: i32, %arg1: memref<2x64x384xf32, #tpu.memory_space<vmem>>, %arg2: memref<64x4xf32, #tpu.memory_space<vmem>>, %arg3: memref<4x64xf32, #tpu.memory_space<vmem>>, %arg4: memref<2x64x384xf32, #tpu.memory_space<vmem>>) attributes {dimension_semantics = [#tpu.dimension_semantics<parallel>], iteration_bounds = array<i64: 2>, scalar_prefetch = 0 : i64, scratch_operands = 0 : i64, tpu.core_type = #tpu.core_type<tc>, window_params = [{transform_indices = @transform_0, window_bounds = array<i64: 2, 64, 384>}, {pipeline_mode = #tpu.pipeline_mode<synchronous>, transform_indices = @transform_1, window_bounds = array<i64: 64, 4>}, {pipeline_mode = #tpu.pipeline_mode<synchronous>, transform_indices = @transform_2, window_bounds = array<i64: 4, 64>}, {transform_indices = @transform_3, window_bounds = array<i64: 2, 64, 384>}]} {
    %c0 = arith.constant 0 : index
    %c0_0 = arith.constant 0 : index
    %c0_1 = arith.constant 0 : index
    %0 = vector.load %arg1[%c0, %c0_0, %c0_1] : memref<2x64x384xf32, #tpu.memory_space<vmem>>, vector<2x64x384xf32>
    %cst = arith.constant dense<0.000000e+00> : vector<2x64xf32>
    %1 = vector.multi_reduction <add>, %0, %cst [2] : vector<2x64x384xf32> to vector<2x64xf32>
    %cst_2 = arith.constant 3.840000e+02 : f32
    %2 = vector.broadcast %cst_2 : f32 to vector<2x64xf32>
    %3 = arith.divf %1, %2 : vector<2x64xf32>
    %c0_3 = arith.constant 0 : index
    %c0_4 = arith.constant 0 : index
    %4 = vector.load %arg2[%c0_3, %c0_4] : memref<64x4xf32, #tpu.memory_space<vmem>>, vector<64x4xf32>
    %cst_5 = arith.constant dense<0.000000e+00> : vector<2x4xf32>
    %5 = tpu.matmul %3, %4, %cst_5 {dimension_numbers = #tpu.dot_dimension_numbers<[1], [0], [0], [1], [0, 0, 1, 1], [], []>} : vector<2x64xf32>, vector<64x4xf32>, vector<2x4xf32> -> vector<2x4xf32>
    %cst_6 = arith.constant 0.000000e+00 : f32
    %6 = vector.broadcast %cst_6 : f32 to vector<2x4xf32>
    %7 = arith.maximumf %5, %6 : vector<2x4xf32>
    %c0_7 = arith.constant 0 : index
    %c0_8 = arith.constant 0 : index
    %8 = vector.load %arg3[%c0_7, %c0_8] : memref<4x64xf32, #tpu.memory_space<vmem>>, vector<4x64xf32>
    %cst_9 = arith.constant dense<0.000000e+00> : vector<2x64xf32>
    %9 = tpu.matmul %7, %8, %cst_9 {dimension_numbers = #tpu.dot_dimension_numbers<[1], [0], [0], [1], [0, 0, 1, 1], [], []>} : vector<2x4xf32>, vector<4x64xf32>, vector<2x64xf32> -> vector<2x64xf32>
    %10 = arith.negf %9 : vector<2x64xf32>
    %11 = math.exp %10 : vector<2x64xf32>
    %cst_10 = arith.constant 1.000000e+00 : f32
    %12 = vector.broadcast %cst_10 : f32 to vector<2x64xf32>
    %13 = arith.addf %12, %11 : vector<2x64xf32>
    %14 = arith.divf %12, %13 : vector<2x64xf32>
    %c0_11 = arith.constant 0 : index
    %c0_12 = arith.constant 0 : index
    %c0_13 = arith.constant 0 : index
    %15 = vector.load %arg1[%c0_11, %c0_12, %c0_13] : memref<2x64x384xf32, #tpu.memory_space<vmem>>, vector<2x64x384xf32>
    %16 = vector.shape_cast %14 : vector<2x64xf32> to vector<2x64x1xf32>
    %17 = vector.broadcast %16 : vector<2x64x1xf32> to vector<2x64x384xf32>
    %18 = arith.mulf %15, %17 : vector<2x64x384xf32>
    %c0_14 = arith.constant 0 : index
    %c0_15 = arith.constant 0 : index
    %c0_16 = arith.constant 0 : index
    %19 = vector.load %arg4[%c0_14, %c0_15, %c0_16] : memref<2x64x384xf32, #tpu.memory_space<vmem>>, vector<2x64x384xf32>
    tpu.vector_store %arg4[%c0_14, %c0_15, %c0_16], %18 {strides = array<i32>} : memref<2x64x384xf32, #tpu.memory_space<vmem>>, vector<2x64x384xf32>,
    return
  }
  func.func @transform_0(%arg0: i32) -> (i32, i32, i32) {
    %c0_i32 = arith.constant 0 : i32
    %c0_i32_0 = arith.constant 0 : i32
    %c0_i32_1 = arith.constant 0 : i32
    return %arg0, %c0_i32, %c0_i32_0 : i32, i32, i32
  }
  func.func @transform_1(%arg0: i32) -> (i32, i32) {
    %c0_i32 = arith.constant 0 : i32
    %c0_i32_0 = arith.constant 0 : i32
    %c0_i32_1 = arith.constant 0 : i32
    return %c0_i32, %c0_i32_0 : i32, i32
  }
  func.func @transform_2(%arg0: i32) -> (i32, i32) {
    %c0_i32 = arith.constant 0 : i32
    %c0_i32_0 = arith.constant 0 : i32
    %c0_i32_1 = arith.constant 0 : i32
    return %c0_i32, %c0_i32_0 : i32, i32
  }
  func.func @transform_3(%arg0: i32) -> (i32, i32, i32) {
    %c0_i32 = arith.constant 0 : i32
    %c0_i32_0 = arith.constant 0 : i32
    %c0_i32_1 = arith.constant 0 : i32
    return %arg0, %c0_i32, %c0_i32_0 : i32, i32, i32
  }
}

</mosaic_0001>

<llo_original>
// kernel: tpu_custom_call.1
$region0: #{tpu_custom_call.1}
  #allocation0 [shape = 'u32[]', space=smem, size = 0x4, offset = 0x4, fixed_abs, tag = 'smem constant byte address 0x4 - core index']
  #allocation1 [shape = 'u32[72,128]{1,0:T(1,128)}', space=vmem, size = 0x9000, scoped, tag = 'internal scratch']
  %s0 = inlined_call_operand.hbm [shape: f32[4,64,384], index: 0, kind: input, shape index: {}]
  %s1 = inlined_call_operand.vmem [shape: f32[64,4], index: 1, kind: input, shape index: {}]
  %s2 = inlined_call_operand.vmem [shape: f32[4,64], index: 2, kind: input, shape index: {}]
  %s3 = inlined_call_operand.hbm [shape: f32[4,64,384], index: 3, kind: output, shape index: {}]
  %s4 = sld [smem:[#allocation0]]
  $region49: #{tpu_custom_call.1} parent=0
    _
  %s6 = ssub.s32 1, %s4
  %s7 = scalar_select 0, %s6, %s4
  $region1: #{tpu_custom_call.1} parent=0
    #allocation2 [shape = 'u8[393216]{0}', space=vmem, size = 0x60000, scoped, tag = 'input window, operand 0']
    #allocation3 [shape = 's32[2]{0}', space=sflag, size = 0x8, scoped, tag = 'scoped memory for tpu_custom_call.1']
    #allocation4 [shape = 's32[2]{0}', space=sflag, size = 0x8, scoped, tag = 'scoped memory for tpu_custom_call.1']
    #allocation5 [shape = 'u8[393216]{0}', space=vmem, size = 0x60000, scoped, tag = 'output window, operand 0']
    %8 = vsyncpa [#allocation3], 0
    %s9 = scalar_lea.sflag [#allocation3], 1
    %10 = vsyncpa %s9, 0
    %11 = vsyncpa [#allocation4], 0
    %s12 = scalar_lea.sflag [#allocation4], 1
    %13 = vsyncpa %s12, 0
    loop: start=0, step=1, limit=4
    $region2: #{tpu_custom_call.1} parent=1 // loop_pre_header
      _
    $region3: #{tpu_custom_call.1} parent=1 // loop_header
      %s15 = sphi 0, %s19
      %p16 = scmp.ge.s32.totalorder %s15, 4
      %s25 = sphi 0, %s27
      %s28 = sphi 0, %s25
      %s29 = sphi 0, %s28
      %s45 = sphi 0, %s29
      %s49 = sphi 0, %s49
      %s51 = sphi 0, %s49
      %s52 = sphi 0, %s51
      %s66 = sphi 0, %s52
      %s70 = sphi 0, %s70
      %s72 = sphi 0, %s70
      %s73 = sphi 0, %s72
      %s87 = sphi 0, %s73
      %s93 = sphi 0, %s95
      %s96 = sphi 0, %s93
      %s97 = sphi 0, %s96
      %s113 = sphi 0, %s97
    $region4: #{tpu_custom_call.1} parent=1 // loop_header_branch
      %18 = sbr.rel (%p16) target = $region8
    $region5: #{tpu_custom_call.1} parent=1 // loop_body
      %s20 = ssub.s32 %s15, 1
      %s21 = ssub.s32 %s15, 2
      %s22 = sadd.s32 %s15, 1
      %s23 = ssub.s32 %s15, %s22
      %p24 = scmp.eq.s32.totalorder %s23, 0
      %s26 = sadd.s32 %s25, 1
      %s27 = scalar_select %p24, %s25, %s26
      %p30 = pneg %p24
      %p31 = scmp.eq.s32.totalorder %s15, 1
      %p32 = por %p30, %p31
      %p33 = scmp.ne.s32.totalorder %s25, %s28
      %p34 = scmp.eq.s32.totalorder %s15, 0
      %p35 = por %p33, %p34
      %p36 = scmp.ne.s32.totalorder %s25, %s28
      %p37 = scmp.eq.s32.totalorder %s20, 1
      %p38 = por %p36, %p37
      %p39 = scmp.ne.s32.totalorder %s28, %s29
      %p40 = scmp.eq.s32.totalorder %s20, 0
      %p41 = por %p39, %p40
      %p42 = scmp.ne.s32.totalorder %s28, %s29
      %p43 = scmp.eq.s32.totalorder %s21, 1
      %p44 = por %p42, %p43
      %p46 = scmp.ne.s32.totalorder %s29, %s45
      %p47 = scmp.eq.s32.totalorder %s21, 0
      %p48 = por %p46, %p47
      %s50 = sadd.s32 %s49, 1
      %p53 = scmp.eq.s32.totalorder %s15, 1
      %p54 = scmp.ne.s32.totalorder %s49, %s51
      %p55 = scmp.eq.s32.totalorder %s15, 0
      %p56 = por %p54, %p55
      %p57 = scmp.ne.s32.totalorder %s49, %s51
      %p58 = scmp.eq.s32.totalorder %s20, 1
      %p59 = por %p57, %p58
      %p60 = scmp.ne.s32.totalorder %s51, %s52
      %p61 = scmp.eq.s32.totalorder %s20, 0
      %p62 = por %p60, %p61
      %p63 = scmp.ne.s32.totalorder %s51, %s52
      %p64 = scmp.eq.s32.totalorder %s21, 1
      %p65 = por %p63, %p64
      %p67 = scmp.ne.s32.totalorder %s52, %s66
      %p68 = scmp.eq.s32.totalorder %s21, 0
      %p69 = por %p67, %p68
      %s71 = sadd.s32 %s70, 1
      %p74 = scmp.eq.s32.totalorder %s15, 1
      %p75 = scmp.ne.s32.totalorder %s70, %s72
      %p76 = scmp.eq.s32.totalorder %s15, 0
      %p77 = por %p75, %p76
      %p78 = scmp.ne.s32.totalorder %s70, %s72
      %p79 = scmp.eq.s32.totalorder %s20, 1
      %p80 = por %p78, %p79
      %p81 = scmp.ne.s32.totalorder %s72, %s73
      %p82 = scmp.eq.s32.totalorder %s20, 0
      %p83 = por %p81, %p82
      %p84 = scmp.ne.s32.totalorder %s72, %s73
      %p85 = scmp.eq.s32.totalorder %s21, 1
      %p86 = por %p84, %p85
      %p88 = scmp.ne.s32.totalorder %s73, %s87
      %p89 = scmp.eq.s32.totalorder %s21, 0
      %p90 = por %p88, %p89
      %s91 = ssub.s32 %s15, %s22
      %p92 = scmp.eq.s32.totalorder %s91, 0
      %s94 = sadd.s32 %s93, 1
      %s95 = scalar_select %p92, %s93, %s94
      %p98 = pneg %p92
      %p99 = scmp.eq.s32.totalorder %s15, 1
      %p100 = por %p98, %p99
      %p101 = scmp.ne.s32.totalorder %s93, %s96
      %p102 = scmp.eq.s32.totalorder %s15, 0
      %p103 = por %p101, %p102
      %p104 = scmp.ne.s32.totalorder %s93, %s96
      %p105 = scmp.eq.s32.totalorder %s20, 1
      %p106 = por %p104, %p105
      %p107 = scmp.ne.s32.totalorder %s96, %s97
      %p108 = scmp.eq.s32.totalorder %s20, 0
      %p109 = por %p107, %p108
      %p110 = scmp.ne.s32.totalorder %s96, %s97
      %p111 = scmp.eq.s32.totalorder %s21, 1
      %p112 = por %p110, %p111
      %p114 = scmp.ne.s32.totalorder %s97, %s113
      %p115 = scmp.eq.s32.totalorder %s21, 0
      %p116 = por %p114, %p115
      %p117 = scmp.le.s32.totalorder 1, %s15
      %p118 = scmp.lt.s32.totalorder %s15, 3
      %p119 = pnand %p117, %p118
      %p120 = pneg %p119
      // Predicated region
      $region9: #{tpu_custom_call.1} parent=5 // pred_check
        _
      $region10: #{tpu_custom_call.1} parent=5 // pred_check_branch
        %122 = sbr.rel (%p119) target = $region12
      $region11: #{tpu_custom_call.1} parent=5 // pred_region
        %s123 = ssub.s32 %s15, 1
        // Predicated region
        $region13: #{tpu_custom_call.1} parent=11 // pred_check
          %p124 = pneg %p62
        $region14: #{tpu_custom_call.1} parent=11 // pred_check_branch
          %126 = sbr.rel (%p124) target = $region16
        $region15: #{tpu_custom_call.1} parent=11 // pred_region
          _
        $region16: #{tpu_custom_call.1} parent=11 // pred_fallthru
          _
        // Predicated region
        $region17: #{tpu_custom_call.1} parent=11 // pred_check
          %p127 = pneg %p83
        $region18: #{tpu_custom_call.1} parent=11 // pred_check_branch
          %129 = sbr.rel (%p127) target = $region20
        $region19: #{tpu_custom_call.1} parent=11 // pred_region
          _
        $region20: #{tpu_custom_call.1} parent=11 // pred_fallthru
          _
      $region12: #{tpu_custom_call.1} parent=5 // pred_fallthru
        _
      %p130 = scmp.lt.s32.totalorder %s15, 2
      // Predicated region
      $region21: #{tpu_custom_call.1} parent=5 // pred_check
        %p131 = pneg %p130
      $region22: #{tpu_custom_call.1} parent=5 // pred_check_branch
        %133 = sbr.rel (%p131) target = $region24
      $region23: #{tpu_custom_call.1} parent=5 // pred_region
        // Predicated region
        $region25: #{tpu_custom_call.1} parent=23 // pred_check
          %p134 = pneg %p35
        $region26: #{tpu_custom_call.1} parent=23 // pred_check_branch
          %136 = sbr.rel (%p134) target = $region28
        $region27: #{tpu_custom_call.1} parent=23 // pred_region
          %s137 = sand.u32 %s25, 1
          %s138 = scalar_lea.sflag [#allocation3], %s137
          %s139 = sand.u32 %s25, 1
          %s140 = smul.addr %s139, 384
          %s141 = scalar_lea.vmem [#allocation2], %s140
          %s142 = smul.u32 2, %s15
          %144 = vsyncadd %s138, 0
          %s145 = smul.addr %s142, 24
          %s146 = smul.addr %s145, 8
          %s147 = scalar_lea.hbm %s0, %s146
          %s148 = sshll.u32 %s147, 4
          %s149 = int_to_ptr.hbm [resolvable:$true] %s148
          %s150 = sshll.u32 %s141, 4
          %s151 = int_to_ptr.vmem [resolvable:$true] %s150
          %156 = dma.hbm_to_vmem [thread:$0]  %s149, 6144, %s151, %s138, 384, 384, 24
        $region28: #{tpu_custom_call.1} parent=23 // pred_fallthru
          _
      $region24: #{tpu_custom_call.1} parent=5 // pred_fallthru
        _
      %p157 = scmp.le.s32.totalorder 1, %s15
      %p158 = scmp.lt.s32.totalorder %s15, 3
      %p159 = pnand %p157, %p158
      %p160 = pneg %p159
      // Predicated region
      $region29: #{tpu_custom_call.1} parent=5 // pred_check
        _
      $region30: #{tpu_custom_call.1} parent=5 // pred_check_branch
        %162 = sbr.rel (%p159) target = $region32
      $region31: #{tpu_custom_call.1} parent=5 // pred_region
        %s163 = ssub.s32 %s15, 1
        %s164 = sand.u32 %s28, 1
        %s165 = scalar_lea.sflag [#allocation3], %s164
        %s166 = sand.u32 %s28, 1
        %s167 = smul.addr %s166, 384
        %s168 = scalar_lea.vmem [#allocation2], %s167
        // Predicated region
        $region33: #{tpu_custom_call.1} parent=31 // pred_check
          %p169 = pneg %p41
        $region34: #{tpu_custom_call.1} parent=31 // pred_check_branch
          %171 = sbr.rel (%p169) target = $region36
        $region35: #{tpu_custom_call.1} parent=31 // pred_region
          %173 = dma.done %s165, 6144
        $region36: #{tpu_custom_call.1} parent=31 // pred_fallthru
          _
        %s174 = sand.u32 %s28, 1
        %s175 = scalar_lea.sflag [#allocation3], %s174
        %s176 = sand.u32 %s28, 1
        %s177 = smul.addr %s176, 384
        %s178 = scalar_lea.vmem [#allocation2], %s177
        %p179 = pneg %p41
        %p180 = pneg %p38
        %p181 = pneg %p62
        %p182 = pneg %p59
        %p183 = pneg %p83
        %p184 = pneg %p80
        %p185 = pneg %p109
        %p186 = pneg %p106
        %s187 = sand.u32 %s96, 1
        %s188 = scalar_lea.sflag [#allocation4], %s187
        %s189 = sand.u32 %s96, 1
        %s190 = smul.addr %s189, 384
        %s191 = scalar_lea.vmem [#allocation5], %s190
        %s192 = smul.u32 2, %s20
        %s193 = smul.u32 2, %s20
        %v194 = vld [vmem:[%s168] sm:$0xff]
        %v195 = vld [vmem:[%s168 + $0x8] sm:$0xff]
        %v196 = vld [vmem:[%s168 + $0x10] sm:$0xff]
        %v197 = vld [vmem:[%s168 + $0x18] sm:$0xff]
        %v198 = vld [vmem:[%s168 + $0x20] sm:$0xff]
        %v199 = vld [vmem:[%s168 + $0x28] sm:$0xff]
        %v200 = vld [vmem:[%s168 + $0x30] sm:$0xff]
        %v201 = vld [vmem:[%s168 + $0x38] sm:$0xff]
        %v202 = vld [vmem:[%s168 + $0x40] sm:$0xff]
        %v203 = vld [vmem:[%s168 + $0x48] sm:$0xff]
        %v204 = vld [vmem:[%s168 + $0x50] sm:$0xff]
        %v205 = vld [vmem:[%s168 + $0x58] sm:$0xff]
        %v206 = vld [vmem:[%s168 + $0x60] sm:$0xff]
        %v207 = vld [vmem:[%s168 + $0x68] sm:$0xff]
        %v208 = vld [vmem:[%s168 + $0x70] sm:$0xff]
        %v209 = vld [vmem:[%s168 + $0x78] sm:$0xff]
        %v210 = vld [vmem:[%s168 + $0x80] sm:$0xff]
        %v211 = vld [vmem:[%s168 + $0x88] sm:$0xff]
        %v212 = vld [vmem:[%s168 + $0x90] sm:$0xff]
        %v213 = vld [vmem:[%s168 + $0x98] sm:$0xff]
        %v214 = vld [vmem:[%s168 + $0xa0] sm:$0xff]
        %v215 = vld [vmem:[%s168 + $0xa8] sm:$0xff]
        %v216 = vld [vmem:[%s168 + $0xb0] sm:$0xff]
        %v217 = vld [vmem:[%s168 + $0xb8] sm:$0xff]
        %v218 = vld [vmem:[%s168 + $0xc0] sm:$0xff]
        %v219 = vld [vmem:[%s168 + $0xc8] sm:$0xff]
        %v220 = vld [vmem:[%s168 + $0xd0] sm:$0xff]
        %v221 = vld [vmem:[%s168 + $0xd8] sm:$0xff]
        %v222 = vld [vmem:[%s168 + $0xe0] sm:$0xff]
        %v223 = vld [vmem:[%s168 + $0xe8] sm:$0xff]
        %v224 = vld [vmem:[%s168 + $0xf0] sm:$0xff]
        %v225 = vld [vmem:[%s168 + $0xf8] sm:$0xff]
        %v226 = vld [vmem:[%s168 + $0x100] sm:$0xff]
        %v227 = vld [vmem:[%s168 + $0x108] sm:$0xff]
        %v228 = vld [vmem:[%s168 + $0x110] sm:$0xff]
        %v229 = vld [vmem:[%s168 + $0x118] sm:$0xff]
        %v230 = vld [vmem:[%s168 + $0x120] sm:$0xff]
        %v231 = vld [vmem:[%s168 + $0x128] sm:$0xff]
        %v232 = vld [vmem:[%s168 + $0x130] sm:$0xff]
        %v233 = vld [vmem:[%s168 + $0x138] sm:$0xff]
        %v234 = vld [vmem:[%s168 + $0x140] sm:$0xff]
        %v235 = vld [vmem:[%s168 + $0x148] sm:$0xff]
        %v236 = vld [vmem:[%s168 + $0x150] sm:$0xff]
        %v237 = vld [vmem:[%s168 + $0x158] sm:$0xff]
        %v238 = vld [vmem:[%s168 + $0x160] sm:$0xff]
        %v239 = vld [vmem:[%s168 + $0x168] sm:$0xff]
        %v240 = vld [vmem:[%s168 + $0x170] sm:$0xff]
        %v241 = vld [vmem:[%s168 + $0x178] sm:$0xff]
        %v242 = vadd.f32 %v194, %v195
        %v243 = vadd.f32 %v242, %v196
        %244 = vadd.xlane.f32.xlu0 %v243
        %v245 = vpop.xlane.xlu0 %244
        %v246 = vadd.f32 %v197, %v198
        %v247 = vadd.f32 %v246, %v199
        %248 = vadd.xlane.f32.xlu0 %v247
        %v249 = vpop.xlane.xlu0 %248
        %v250 = vadd.f32 %v200, %v201
        %v251 = vadd.f32 %v250, %v202
        %252 = vadd.xlane.f32.xlu0 %v251
        %v253 = vpop.xlane.xlu0 %252
        %v254 = vadd.f32 %v203, %v204
        %v255 = vadd.f32 %v254, %v205
        %256 = vadd.xlane.f32.xlu0 %v255
        %v257 = vpop.xlane.xlu0 %256
        %v258 = vadd.f32 %v206, %v207
        %v259 = vadd.f32 %v258, %v208
        %260 = vadd.xlane.f32.xlu0 %v259
        %v261 = vpop.xlane.xlu0 %260
        %v262 = vadd.f32 %v209, %v210
        %v263 = vadd.f32 %v262, %v211
        %264 = vadd.xlane.f32.xlu0 %v263
        %v265 = vpop.xlane.xlu0 %264
        %v266 = vadd.f32 %v212, %v213
        %v267 = vadd.f32 %v266, %v214
        %268 = vadd.xlane.f32.xlu0 %v267
        %v269 = vpop.xlane.xlu0 %268
        %v270 = vadd.f32 %v215, %v216
        %v271 = vadd.f32 %v270, %v217
        %272 = vadd.xlane.f32.xlu0 %v271
        %v273 = vpop.xlane.xlu0 %272
        %v274 = vadd.f32 %v218, %v219
        %v275 = vadd.f32 %v274, %v220
        %276 = vadd.xlane.f32.xlu0 %v275
        %v277 = vpop.xlane.xlu0 %276
        %v278 = vadd.f32 %v221, %v222
        %v279 = vadd.f32 %v278, %v223
        %280 = vadd.xlane.f32.xlu0 %v279
        %v281 = vpop.xlane.xlu0 %280
        %v282 = vadd.f32 %v224, %v225
        %v283 = vadd.f32 %v282, %v226
        %284 = vadd.xlane.f32.xlu0 %v283
        %v285 = vpop.xlane.xlu0 %284
        %v286 = vadd.f32 %v227, %v228
        %v287 = vadd.f32 %v286, %v229
        %288 = vadd.xlane.f32.xlu0 %v287
        %v289 = vpop.xlane.xlu0 %288
        %v290 = vadd.f32 %v230, %v231
        %v291 = vadd.f32 %v290, %v232
        %292 = vadd.xlane.f32.xlu0 %v291
        %v293 = vpop.xlane.xlu0 %292
        %v294 = vadd.f32 %v233, %v234
        %v295 = vadd.f32 %v294, %v235
        %296 = vadd.xlane.f32.xlu0 %v295
        %v297 = vpop.xlane.xlu0 %296
        %v298 = vadd.f32 %v236, %v237
        %v299 = vadd.f32 %v298, %v238
        %300 = vadd.xlane.f32.xlu0 %v299
        %v301 = vpop.xlane.xlu0 %300
        %v302 = vadd.f32 %v239, %v240
        %v303 = vadd.f32 %v302, %v241
        %304 = vadd.xlane.f32.xlu0 %v303
        %v305 = vpop.xlane.xlu0 %304
        %v306 = vrcp.pop 384.0
        %v307 = vmul.f32 384.0, %v306
        %v308 = vsub.f32 1.0, %v307
        %v309 = vmul.f32 %v306, %v308
        %v310 = vadd.f32 %v306, %v309
        %vm311 = vweird.f32 %v306
        %v312 = vsel %vm311, %v306, %v310
        %v313 = vmul.f32 %v245, %v312
        %v314 = vmul.f32 %v249, %v312
        %v315 = vmul.f32 %v253, %v312
        %v316 = vmul.f32 %v257, %v312
        %v317 = vmul.f32 %v261, %v312
        %v318 = vmul.f32 %v265, %v312
        %v319 = vmul.f32 %v269, %v312
        %v320 = vmul.f32 %v273, %v312
        %v321 = vmul.f32 %v277, %v312
        %v322 = vmul.f32 %v281, %v312
        %v323 = vmul.f32 %v285, %v312
        %v324 = vmul.f32 %v289, %v312
        %v325 = vmul.f32 %v293, %v312
        %v326 = vmul.f32 %v297, %v312
        %v327 = vmul.f32 %v301, %v312
        %v328 = vmul.f32 %v305, %v312
        %v329 = vld [vmem:[%s1] sm:$0xff]
        %v330 = vld [vmem:[%s1 + $0x8] sm:$0xff]
        %v331 = vld [vmem:[%s1 + $0x10] sm:$0xff]
        %v332 = vld [vmem:[%s1 + $0x18] sm:$0xff]
        %v333 = vld [vmem:[%s1 + $0x20] sm:$0xff]
        %v334 = vld [vmem:[%s1 + $0x28] sm:$0xff]
        %v335 = vld [vmem:[%s1 + $0x30] sm:$0xff]
        %v336 = vld [vmem:[%s1 + $0x38] sm:$0xff]
        %v353 = vlaneseq
        %v354 = vand.u32 %v353, 127
        %v355 = vperm.slane %v313, %v354
        %v356 = vadd.s32 %v354, 4294967288
        %v357 = vperm.slane %v314, %v356
        %vm358 = vcmask 130112
        %v359 = vsel %vm358, %v357, %v355
        %v360 = vadd.s32 %v354, 4294967280
        %v361 = vperm.slane %v315, %v360
        %vm362 = vcmask 195712
        %v363 = vsel %vm362, %v361, %v359
        %v364 = vadd.s32 %v354, 4294967272
        %v365 = vperm.slane %v316, %v364
        %vm366 = vcmask 261312
        %v367 = vsel %vm366, %v365, %v363
        %v368 = vadd.s32 %v354, 4294967264
        %v369 = vperm.slane %v317, %v368
        %vm370 = vcmask 326912
        %v371 = vsel %vm370, %v369, %v367
        %v372 = vadd.s32 %v354, 4294967256
        %v373 = vperm.slane %v318, %v372
        %vm374 = vcmask 392512
        %v375 = vsel %vm374, %v373, %v371
        %v376 = vadd.s32 %v354, 4294967248
        %v377 = vperm.slane %v319, %v376
        %vm378 = vcmask 458112
        %v379 = vsel %vm378, %v377, %v375
        %v380 = vadd.s32 %v354, 4294967240
        %v381 = vperm.slane %v320, %v380
        %vm382 = vcmask 523712
        %v383 = vsel %vm382, %v381, %v379
        %v384 = vperm.slane %v321, %v354
        %v385 = vperm.slane %v322, %v356
        %v386 = vsel %vm358, %v385, %v384
        %v387 = vperm.slane %v323, %v360
        %v388 = vsel %vm362, %v387, %v386
        %v389 = vperm.slane %v324, %v364
        %v390 = vsel %vm366, %v389, %v388
        %v391 = vperm.slane %v325, %v368
        %v392 = vsel %vm370, %v391, %v390
        %v393 = vperm.slane %v326, %v372
        %v394 = vsel %vm374, %v393, %v392
        %v395 = vperm.slane %v327, %v376
        %v396 = vsel %vm378, %v395, %v394
        %v397 = vperm.slane %v328, %v380
        %v398 = vsel %vm382, %v397, %v396
        %vm399 = vcmask 1041409
        %v400 = vsel %vm399, %v398, %v383
        %vm401 = vcmask 523264
        %v402 = vsel %vm401, %v400, 0
        %404 = vmatpush.msra.mxu0 0.0
        %405 = vmatpush.msra.mxu0 0.0
        %406 = vmatpush.msra.mxu0 0.0
        %407 = vmatpush.msra.mxu0 0.0
        %408 = vmatpush.msra.mxu0 0.0
        %409 = vmatpush.msra.mxu0 0.0
        %410 = vmatpush.msra.mxu0 0.0
        %411 = vmatpush.msra.mxu0 0.0
        %412 = vmatpush.msra.mxu0 %v336
        %413 = vmatpush.msra.mxu0 %v335
        %414 = vmatpush.msra.mxu0 %v334
        %415 = vmatpush.msra.mxu0 %v333
        %416 = vmatpush.msra.mxu0 %v332
        %417 = vmatpush.msra.mxu0 %v331
        %418 = vmatpush.msra.mxu0 %v330
        %419 = vmatpush.msra.mxu0 %v329
        %420 = vmatmul.f32.gmra.mxu0 %v402
        %v421 = vpop.f32.mrf.mxu0
        %v422 = vadd.f32 0.0, %v421
        %423 = vdwg.mxu0
        %v424 = vmax.f32 %v422, 0.0
        %v425 = vld [vmem:[%s2] sm:$0xf]
        %vm426 = vcmask 31744
        %v428 = vsel %vm426, %v424, 0
        %vm430 = vcmask 1043456
        %v432 = vsel %vm430, %v425, 0
        %434 = vmatpush.msra.mxu0 0.0
        %435 = vmatpush.msra.mxu0 0.0
        %436 = vmatpush.msra.mxu0 0.0
        %437 = vmatpush.msra.mxu0 0.0
        %438 = vmatpush.msra.mxu0 0.0
        %439 = vmatpush.msra.mxu0 0.0
        %440 = vmatpush.msra.mxu0 0.0
        %441 = vmatpush.msra.mxu0 0.0
        %442 = vmatpush.msra.mxu0 0.0
        %443 = vmatpush.msra.mxu0 0.0
        %444 = vmatpush.msra.mxu0 0.0
        %445 = vmatpush.msra.mxu0 0.0
        %446 = vmatpush.msra.mxu0 0.0
        %447 = vmatpush.msra.mxu0 0.0
        %448 = vmatpush.msra.mxu0 0.0
        %449 = vmatpush.msra.mxu0 %v432
        %450 = vmatmul.f32.gmra.mxu0 %v428
        %v451 = vpop.f32.mrf.mxu0
        %v452 = vadd.f32 0.0, %v451
        %453 = vdwg.mxu0
        %v454 = vxor.u32 %v452, 2147483648
        %v455 = vmul.f32 %v454, 1.442695
        %v456 = vpow.pop %v455
        %v457 = vadd.f32 %v456, 1.0
        %v458 = vrcp.pop %v457
        %v459 = vmul.f32 %v457, %v458
        %v460 = vsub.f32 1.0, %v459
        %v461 = vmul.f32 %v458, %v460
        %v462 = vadd.f32 %v458, %v461
        %vm463 = vweird.f32 %v457
        %vm464 = vweird.f32 %v458
        %vm465 = vmor %vm463, %vm464
        %v466 = vsel %vm465, %v458, %v462
        %v467 = vand.u32 2147483647, %v457
        %vm468 = vcmp.eq.f32.partialorder %v467, 8.507059e+37
        %v469 = vand.u32 %v457, 2147483648
        %v470 = vor.u32 1.1754944e-38, %v469
        %v471 = vsel %vm468, %v470, %v466
        %v472 = vmul.f32 1.0, %v471
        %v473 = vperm.slane %v472, 0
        %v474 = vlaneseq
        %v475 = vshrl.u32 %v474, 7
        %477 = vset.pattern.permute.xlu0 %v475
        %478 = vperm.xlu0 %477, %v473
        %v479 = vpop.permute.xlu0 %478
        %v480 = vlaneseq
        %v481 = vshrl.u32 %v480, 7
        %v482 = vadd.s32 %v481, 8
        %483 = vset.pattern.permute.xlu0 %v482
        %484 = vperm.xlu0 %483, %v473
        %v485 = vpop.permute.xlu0 %484
        %v486 = vlaneseq
        %v487 = vshrl.u32 %v486, 7
        %v488 = vadd.s32 %v487, 16
        %489 = vset.pattern.permute.xlu0 %v488
        %490 = vperm.xlu0 %489, %v473
        %v491 = vpop.permute.xlu0 %490
        %v492 = vlaneseq
        %v493 = vshrl.u32 %v492, 7
        %v494 = vadd.s32 %v493, 24
        %495 = vset.pattern.permute.xlu0 %v494
        %496 = vperm.xlu0 %495, %v473
        %v497 = vpop.permute.xlu0 %496
        %v498 = vlaneseq
        %v499 = vshrl.u32 %v498, 7
        %v500 = vadd.s32 %v499, 32
        %501 = vset.pattern.permute.xlu0 %v500
        %502 = vperm.xlu0 %501, %v473
        %v503 = vpop.permute.xlu0 %502
        %v504 = vlaneseq
        %v505 = vshrl.u32 %v504, 7
        %v506 = vadd.s32 %v505, 40
        %507 = vset.pattern.permute.xlu0 %v506
        %508 = vperm.xlu0 %507, %v473
        %v509 = vpop.permute.xlu0 %508
        %v510 = vlaneseq
        %v511 = vshrl.u32 %v510, 7
        %v512 = vadd.s32 %v511, 48
        %513 = vset.pattern.permute.xlu0 %v512
        %514 = vperm.xlu0 %513, %v473
        %v515 = vpop.permute.xlu0 %514
        %v516 = vlaneseq
        %v517 = vshrl.u32 %v516, 7
        %v518 = vadd.s32 %v517, 56
        %519 = vset.pattern.permute.xlu0 %v518
        %520 = vperm.xlu0 %519, %v473
        %v521 = vpop.permute.xlu0 %520
        %v522 = vperm.slane %v472, 1
        %v523 = vlaneseq
        %v524 = vshrl.u32 %v523, 7
        %526 = vset.pattern.permute.xlu0 %v524
        %527 = vperm.xlu0 %526, %v522
        %v528 = vpop.permute.xlu0 %527
        %v529 = vlaneseq
        %v530 = vshrl.u32 %v529, 7
        %v531 = vadd.s32 %v530, 8
        %532 = vset.pattern.permute.xlu0 %v531
        %533 = vperm.xlu0 %532, %v522
        %v534 = vpop.permute.xlu0 %533
        %v535 = vlaneseq
        %v536 = vshrl.u32 %v535, 7
        %v537 = vadd.s32 %v536, 16
        %538 = vset.pattern.permute.xlu0 %v537
        %539 = vperm.xlu0 %538, %v522
        %v540 = vpop.permute.xlu0 %539
        %v541 = vlaneseq
        %v542 = vshrl.u32 %v541, 7
        %v543 = vadd.s32 %v542, 24
        %544 = vset.pattern.permute.xlu0 %v543
        %545 = vperm.xlu0 %544, %v522
        %v546 = vpop.permute.xlu0 %545
        %v547 = vlaneseq
        %v548 = vshrl.u32 %v547, 7
        %v549 = vadd.s32 %v548, 32
        %550 = vset.pattern.permute.xlu0 %v549
        %551 = vperm.xlu0 %550, %v522
        %v552 = vpop.permute.xlu0 %551
        %v553 = vlaneseq
        %v554 = vshrl.u32 %v553, 7
        %v555 = vadd.s32 %v554, 40
        %556 = vset.pattern.permute.xlu0 %v555
        %557 = vperm.xlu0 %556, %v522
        %v558 = vpop.permute.xlu0 %557
        %v559 = vlaneseq
        %v560 = vshrl.u32 %v559, 7
        %v561 = vadd.s32 %v560, 48
        %562 = vset.pattern.permute.xlu0 %v561
        %563 = vperm.xlu0 %562, %v522
        %v564 = vpop.permute.xlu0 %563
        %v565 = vlaneseq
        %v566 = vshrl.u32 %v565, 7
        %v567 = vadd.s32 %v566, 56
        %568 = vset.pattern.permute.xlu0 %v567
        %569 = vperm.xlu0 %568, %v522
        %v570 = vpop.permute.xlu0 %569
        %v571 = vmul.f32 %v194, %v479
        %v572 = vmul.f32 %v195, %v479
        %v573 = vmul.f32 %v196, %v479
        %v574 = vmul.f32 %v197, %v485
        %v575 = vmul.f32 %v198, %v485
        %v576 = vmul.f32 %v199, %v485
        %v577 = vmul.f32 %v200, %v491
        %v578 = vmul.f32 %v201, %v491
        %v579 = vmul.f32 %v202, %v491
        %v580 = vmul.f32 %v203, %v497
        %v581 = vmul.f32 %v204, %v497
        %v582 = vmul.f32 %v205, %v497
        %v583 = vmul.f32 %v206, %v503
        %v584 = vmul.f32 %v207, %v503
        %v585 = vmul.f32 %v208, %v503
        %v586 = vmul.f32 %v209, %v509
        %v587 = vmul.f32 %v210, %v509
        %v588 = vmul.f32 %v211, %v509
        %v589 = vmul.f32 %v212, %v515
        %v590 = vmul.f32 %v213, %v515
        %v591 = vmul.f32 %v214, %v515
        %v592 = vmul.f32 %v215, %v521
        %v593 = vmul.f32 %v216, %v521
        %v594 = vmul.f32 %v217, %v521
        %v595 = vmul.f32 %v218, %v528
        %v596 = vmul.f32 %v219, %v528
        %v597 = vmul.f32 %v220, %v528
        %v598 = vmul.f32 %v221, %v534
        %v599 = vmul.f32 %v222, %v534
        %v600 = vmul.f32 %v223, %v534
        %v601 = vmul.f32 %v224, %v540
        %v602 = vmul.f32 %v225, %v540
        %v603 = vmul.f32 %v226, %v540
        %v604 = vmul.f32 %v227, %v546
        %v605 = vmul.f32 %v228, %v546
        %v606 = vmul.f32 %v229, %v546
        %v607 = vmul.f32 %v230, %v552
        %v608 = vmul.f32 %v231, %v552
        %v609 = vmul.f32 %v232, %v552
        %v610 = vmul.f32 %v233, %v558
        %v611 = vmul.f32 %v234, %v558
        %v612 = vmul.f32 %v235, %v558
        %v613 = vmul.f32 %v236, %v564
        %v614 = vmul.f32 %v237, %v564
        %v615 = vmul.f32 %v238, %v564
        %v616 = vmul.f32 %v239, %v570
        %v617 = vmul.f32 %v240, %v570
        %v618 = vmul.f32 %v241, %v570
        %619 = vst [vmem:[%s191] sm:$0xff] %v571
        %620 = vst [vmem:[%s191 + $0x8] sm:$0xff] %v572
        %621 = vst [vmem:[%s191 + $0x10] sm:$0xff] %v573
        %622 = vst [vmem:[%s191 + $0x18] sm:$0xff] %v574
        %623 = vst [vmem:[%s191 + $0x20] sm:$0xff] %v575
        %624 = vst [vmem:[%s191 + $0x28] sm:$0xff] %v576
        %625 = vst [vmem:[%s191 + $0x30] sm:$0xff] %v577
        %626 = vst [vmem:[%s191 + $0x38] sm:$0xff] %v578
        %627 = vst [vmem:[%s191 + $0x40] sm:$0xff] %v579
        %628 = vst [vmem:[%s191 + $0x48] sm:$0xff] %v580
        %629 = vst [vmem:[%s191 + $0x50] sm:$0xff] %v581
        %630 = vst [vmem:[%s191 + $0x58] sm:$0xff] %v582
        %631 = vst [vmem:[%s191 + $0x60] sm:$0xff] %v583
        %632 = vst [vmem:[%s191 + $0x68] sm:$0xff] %v584
        %633 = vst [vmem:[%s191 + $0x70] sm:$0xff] %v585
        %634 = vst [vmem:[%s191 + $0x78] sm:$0xff] %v586
        %635 = vst [vmem:[%s191 + $0x80] sm:$0xff] %v587
        %636 = vst [vmem:[%s191 + $0x88] sm:$0xff] %v588
        %637 = vst [vmem:[%s191 + $0x90] sm:$0xff] %v589
        %638 = vst [vmem:[%s191 + $0x98] sm:$0xff] %v590
        %639 = vst [vmem:[%s191 + $0xa0] sm:$0xff] %v591
        %640 = vst [vmem:[%s191 + $0xa8] sm:$0xff] %v592
        %641 = vst [vmem:[%s191 + $0xb0] sm:$0xff] %v593
        %642 = vst [vmem:[%s191 + $0xb8] sm:$0xff] %v594
        %643 = vst [vmem:[%s191 + $0xc0] sm:$0xff] %v595
        %644 = vst [vmem:[%s191 + $0xc8] sm:$0xff] %v596
        %645 = vst [vmem:[%s191 + $0xd0] sm:$0xff] %v597
        %646 = vst [vmem:[%s191 + $0xd8] sm:$0xff] %v598
        %647 = vst [vmem:[%s191 + $0xe0] sm:$0xff] %v599
        %648 = vst [vmem:[%s191 + $0xe8] sm:$0xff] %v600
        %649 = vst [vmem:[%s191 + $0xf0] sm:$0xff] %v601
        %650 = vst [vmem:[%s191 + $0xf8] sm:$0xff] %v602
        %651 = vst [vmem:[%s191 + $0x100] sm:$0xff] %v603
        %652 = vst [vmem:[%s191 + $0x108] sm:$0xff] %v604
        %653 = vst [vmem:[%s191 + $0x110] sm:$0xff] %v605
        %654 = vst [vmem:[%s191 + $0x118] sm:$0xff] %v606
        %655 = vst [vmem:[%s191 + $0x120] sm:$0xff] %v607
        %656 = vst [vmem:[%s191 + $0x128] sm:$0xff] %v608
        %657 = vst [vmem:[%s191 + $0x130] sm:$0xff] %v609
        %658 = vst [vmem:[%s191 + $0x138] sm:$0xff] %v610
        %659 = vst [vmem:[%s191 + $0x140] sm:$0xff] %v611
        %660 = vst [vmem:[%s191 + $0x148] sm:$0xff] %v612
        %661 = vst [vmem:[%s191 + $0x150] sm:$0xff] %v613
        %662 = vst [vmem:[%s191 + $0x158] sm:$0xff] %v614
        %663 = vst [vmem:[%s191 + $0x160] sm:$0xff] %v615
        %664 = vst [vmem:[%s191 + $0x168] sm:$0xff] %v616
        %665 = vst [vmem:[%s191 + $0x170] sm:$0xff] %v617
        %666 = vst [vmem:[%s191 + $0x178] sm:$0xff] %v618
        %s667 = sand.u32 %s96, 1
        %s668 = scalar_lea.sflag [#allocation4], %s667
        %s669 = sand.u32 %s96, 1
        %s670 = smul.addr %s669, 384
        %s671 = scalar_lea.vmem [#allocation5], %s670
        // Predicated region
        $region37: #{tpu_custom_call.1} parent=31 // pred_check
          %p672 = pneg %p106
        $region38: #{tpu_custom_call.1} parent=31 // pred_check_branch
          %674 = sbr.rel (%p672) target = $region40
        $region39: #{tpu_custom_call.1} parent=31 // pred_region
          %s675 = smul.u32 2, %s20
          %677 = vsyncadd %s668, 0
          %s678 = smul.addr %s675, 24
          %s679 = smul.addr %s678, 8
          %s680 = scalar_lea.hbm %s3, %s679
          %s681 = sshll.u32 %s671, 4
          %s682 = int_to_ptr.vmem [resolvable:$true] %s681
          %s683 = sshll.u32 %s680, 4
          %s684 = int_to_ptr.hbm [resolvable:$true] %s683
          %689 = dma.vmem_to_hbm [thread:$0]  %s682, 6144, %s684, %s668, 384, 384, 24
        $region40: #{tpu_custom_call.1} parent=31 // pred_fallthru
          _
      $region32: #{tpu_custom_call.1} parent=5 // pred_fallthru
        _
      %p690 = scmp.le.s32.totalorder 2, %s15
      // Predicated region
      $region41: #{tpu_custom_call.1} parent=5 // pred_check
        %p691 = pneg %p690
      $region42: #{tpu_custom_call.1} parent=5 // pred_check_branch
        %693 = sbr.rel (%p691) target = $region44
      $region43: #{tpu_custom_call.1} parent=5 // pred_region
        %s694 = ssub.s32 %s15, 2
        // Predicated region
        $region45: #{tpu_custom_call.1} parent=43 // pred_check
          %p695 = pneg %p112
        $region46: #{tpu_custom_call.1} parent=43 // pred_check_branch
          %697 = sbr.rel (%p695) target = $region48
        $region47: #{tpu_custom_call.1} parent=43 // pred_region
          %s698 = sand.u32 %s97, 1
          %s699 = scalar_lea.sflag [#allocation4], %s698
          %s700 = sand.u32 %s97, 1
          %s701 = smul.addr %s700, 384
          %s702 = scalar_lea.vmem [#allocation5], %s701
          %704 = dma.done %s699, 6144
        $region48: #{tpu_custom_call.1} parent=43 // pred_fallthru
          _
      $region44: #{tpu_custom_call.1} parent=5 // pred_fallthru
        _
    $region6: #{tpu_custom_call.1} parent=1 // loop_footer
      %s19 = sadd.s32 1, %s15
    $region7: #{tpu_custom_call.1} parent=1 // loop_footer_branch
      %14 = sbr.rel target = $region3
    $region8: #{tpu_custom_call.1} parent=1 // loop_exit
      _
    %705 = vsyncpa [#allocation3], 1
    %s706 = scalar_lea.sflag [#allocation3], 1
    %707 = vsyncpa %s706, 1
    %708 = vsyncpa [#allocation4], 1
    %s709 = scalar_lea.sflag [#allocation4], 1
    %710 = vsyncpa %s709, 1

</llo_original>
